<compile_context>
chip_gen: v7x
topology: tpu7x:2x2x1
jax: 0.10.0
libtpu: 0.0.40
codegen_flags: <defaults>
</compile_context>

<pallas_src>
import math

import jax
import jax.numpy as jnp
from jax import lax
from jax.experimental import pallas as pl
from jax.experimental.pallas import tpu as pltpu

block_size = 8     # T (max sequence length / positional table rows)
n_embed = 32       # embedding dim
vocab_size = 65    # synthetic vocab (tiny-shakespeare style char vocab)

_LANE = 128
_SUBLANE = 8
_TM_TARGET = 1024  # rows of (B*T) per grid step; comfortably fits VMEM on v5e/v6e/v7x


def _round_up(x, m):
    return ((x + m - 1) // m) * m


def _bigram_kernel(idx_ref, tok_logit_ref, pos_slab_ref, out_ref):
    """logits = one_hot(idx) @ tok_logit_table + pos_logit_slab (bias pre-folded).

    idx_ref       : (TM, 1)   int32   flattened token ids for this tile
    tok_logit_ref : (Vp, Vp)  float32 token -> logits table (VMEM resident)
    pos_slab_ref  : (TM, Vp)  float32 positional logits + bias, period-T tiled
    out_ref       : (TM, Vp)  float32 lane-dense logits tile
    """
    tm = idx_ref.shape[0]
    vpad = tok_logit_ref.shape[0]
    idx = idx_ref[...]                                           # (TM, 1)
    lane = lax.broadcasted_iota(jnp.int32, (tm, vpad), 1)
    onehot = (lane == idx).astype(jnp.float32)                   # exact gather
    out_ref[...] = jnp.dot(onehot, tok_logit_ref[...],
                           preferred_element_type=jnp.float32) + pos_slab_ref[...]


def prepare_params(tok_table, pos_table, lm_w, lm_b):
    """One-time parameter fold, hoisted out of the per-call path.

    tok_logit[v, :] = tok_table[v] @ lm_w.T   (zero-padded to (Vp, Vp), Vp=128)
    pos_logit[t, :] = pos_table[t] @ lm_w.T   ((P, Vp))
    """
    V, E = tok_table.shape
    vpad = _round_up(V, _LANE)
    hi = jax.lax.Precision.HIGHEST
    w_t = jnp.zeros((E, vpad), jnp.float32).at[:, :V].set(
        lm_w.astype(jnp.float32).T)                              # (E, Vp)
    tok_pad = jnp.zeros((vpad, E), jnp.float32).at[:V, :].set(
        tok_table.astype(jnp.float32))
    tok_logit = jnp.dot(tok_pad, w_t, precision=hi)              # (Vp, Vp) ~64 KiB
    pos_logit = jnp.dot(pos_table.astype(jnp.float32), w_t, precision=hi)  # (P, Vp)
    bias = jnp.zeros((vpad,), jnp.float32).at[:V].set(lm_b.astype(jnp.float32))
    return {"tok_logit": tok_logit, "pos_logit": pos_logit, "bias": bias,
            "vocab": V, "block_size": pos_table.shape[0]}


def bigram_forward(idx, params, targets=None):
    """Pallas forward pass of BigramLanguageModel.

    idx     : (B, T) int32, T <= block_size
    params  : output of prepare_params (pre-folded, pre-laid-out tables)
    returns : (logits (B,T,V), None)              when targets is None
              (logits (B*T,V), scalar loss)       when targets is given (torch parity)
    """
    B, T = idx.shape
    V = params["vocab"]
    P = params["block_size"]
    assert T <= P, f"sequence length {T} exceeds block_size {P}"

    tok_logit = params["tok_logit"]
    vpad = tok_logit.shape[0]
    BT = B * T

    # Tile size: a multiple of lcm(T, 8) so each grid block starts at position 0
    # (periodic positional slab stays valid) and sublane alignment holds.
    unit = math.lcm(T, _SUBLANE)
    tm = _round_up(min(BT, _TM_TARGET), unit)
    nblk = pl.cdiv(BT, tm)
    bt_pad = nblk * tm

    idx_flat = idx.reshape(BT).astype(jnp.int32)
    if bt_pad != BT:
        idx_flat = jnp.concatenate([idx_flat, jnp.zeros((bt_pad - BT,), jnp.int32)])
    idx_flat = idx_flat.reshape(bt_pad, 1)
    # TODO(synk): at very large BT the (TM,1) idx tile is lane-padded ~128x in VMEM;
    # pack 128 ids per row (or scalar-prefetch) if the idx DMA ever shows up in profiles.

    # Positional logits repeat with period T; build a TM-row slab once (bias folded in).
    pos_slab = jnp.tile(params["pos_logit"][:T], (tm // T, 1)) + params["bias"][None, :]

    logits_pad = pl.pallas_call(
        _bigram_kernel,
        out_shape=jax.ShapeDtypeStruct((bt_pad, vpad), jnp.float32),
        grid=(nblk,),
        in_specs=[
            pl.BlockSpec((tm, 1), lambda i: (i, 0)),         # idx tile (pipelined)
            pl.BlockSpec((vpad, vpad), lambda i: (0, 0)),    # resident token->logit table
            pl.BlockSpec((tm, vpad), lambda i: (0, 0)),      # resident positional slab
        ],
        out_specs=pl.BlockSpec((tm, vpad), lambda i: (i, 0)),  # lane-dense store
        compiler_params=pltpu.CompilerParams(
            dimension_semantics=("parallel",),               # v7x: shard over 2 TCs
            vmem_limit_bytes=32 * 1024 * 1024,
        ),
    )(idx_flat, tok_logit, pos_slab)

    logits = logits_pad[:BT, :V].reshape(B, T, V)

    if targets is None:
        return logits, None

    # Cross-entropy on the Pallas logits (tiny reduction; plain JAX, not a kernel).
    logits2d = logits.reshape(BT, V)
    tgt = targets.reshape(BT)
    logz = jax.nn.logsumexp(logits2d, axis=-1)
    gold = jnp.take_along_axis(logits2d, tgt[:, None], axis=-1)[:, 0]
    loss = jnp.mean(logz - gold)
    return logits2d, loss          # torch parity: logits reshaped to (B*T, C) with targets


def _reference_forward(idx, tok_table, pos_table, lm_w, lm_b):
    B, T = idx.shape
    hi = jax.lax.Precision.HIGHEST
    tok_emb = tok_table[idx]                    # (B, T, E)
    pos_emb = pos_table[jnp.arange(T)]          # (T, E)
    x = tok_emb + pos_emb[None, :, :]
    return jnp.einsum("bte,ve->btv", x, lm_w, precision=hi) + lm_b


def _reference_loss(logits, targets):
    B, T, V = logits.shape
    l2 = logits.reshape(B * T, V)
    t = targets.reshape(B * T)
    logz = jax.nn.logsumexp(l2, axis=-1)
    gold = jnp.take_along_axis(l2, t[:, None], axis=-1)[:, 0]
    return jnp.mean(logz - gold)


if __name__ == "__main__":
    key = jax.random.PRNGKey(0)
    k_tok, k_pos, k_w, k_b, k_idx, k_tgt = jax.random.split(key, 6)

    # Deterministic synthetic parameters (shapes match the nn.Module __init__).
    tok_table = jax.random.normal(k_tok, (vocab_size, n_embed), jnp.float32)
    pos_table = jax.random.normal(k_pos, (block_size, n_embed), jnp.float32)
    lm_w = jax.random.normal(k_w, (vocab_size, n_embed), jnp.float32) * 0.1
    lm_b = jax.random.normal(k_b, (vocab_size,), jnp.float32) * 0.1

    # Small example input: batch=2, seq=block_size=8.
    B, T = 2, block_size
    idx = jax.random.randint(k_idx, (B, T), 0, vocab_size, jnp.int32)
    targets = jax.random.randint(k_tgt, (B, T), 0, vocab_size, jnp.int32)

    params = prepare_params(tok_table, pos_table, lm_w, lm_b)   # one-time fold

    # targets=None path (matches torch (B, T, C) logits, loss=None).
    logits, loss = bigram_forward(idx, params)
    logits = jax.block_until_ready(logits)
    ref = _reference_forward(idx, tok_table, pos_table, lm_w, lm_b)
    assert logits.shape == (B, T, vocab_size)
    assert loss is None
    assert jnp.allclose(logits, ref, atol=1e-3, rtol=1e-3), \
        f"max abs diff {float(jnp.max(jnp.abs(logits - ref)))}"

    # targets path (torch parity: (B*T, C) logits + scalar cross-entropy loss).
    logits2, loss2 = bigram_forward(idx, params, targets)
    loss2 = jax.block_until_ready(loss2)
    ref_loss = _reference_loss(ref, targets)
    assert logits2.shape == (B * T, vocab_size)
    assert jnp.allclose(loss2, ref_loss, atol=1e-3, rtol=1e-3), \
        f"loss {float(loss2)} vs ref {float(ref_loss)}"

    print("KERNEL_OK")
</pallas_src>

<mosaic_0001>
module attributes {stable_mosaic.version = 11 : i64} {
  func.func @_bigram_kernel(%arg0: i32, %arg1: memref<16x1xi32, #tpu.memory_space<vmem>>, %arg2: memref<128x128xf32, #tpu.memory_space<vmem>>, %arg3: memref<16x128xf32, #tpu.memory_space<vmem>>, %arg4: memref<16x128xf32, #tpu.memory_space<vmem>>) attributes {dimension_semantics = [#tpu.dimension_semantics<parallel>], iteration_bounds = array<i64: 1>, scalar_prefetch = 0 : i64, scratch_operands = 0 : i64, tpu.core_type = #tpu.core_type<tc>, window_params = [{transform_indices = @transform_0, window_bounds = array<i64: 16, 1>}, {pipeline_mode = #tpu.pipeline_mode<synchronous>, transform_indices = @transform_1, window_bounds = array<i64: 128, 128>}, {pipeline_mode = #tpu.pipeline_mode<synchronous>, transform_indices = @transform_2, window_bounds = array<i64: 16, 128>}, {transform_indices = @transform_3, window_bounds = array<i64: 16, 128>}]} {
    %c0 = arith.constant 0 : index
    %c0_0 = arith.constant 0 : index
    %0 = vector.load %arg1[%c0, %c0_0] : memref<16x1xi32, #tpu.memory_space<vmem>>, vector<16x1xi32>
    %1 = tpu.iota {dimensions = array<i32: 1>} : vector<16x128xi32>
    %2 = vector.broadcast %0 : vector<16x1xi32> to vector<16x128xi32>
    %3 = arith.cmpi eq, %1, %2 : vector<16x128xi32>
    %4 = arith.extui %3 : vector<16x128xi1> to vector<16x128xi32>
    %5 = arith.sitofp %4 : vector<16x128xi32> to vector<16x128xf32>
    %c0_1 = arith.constant 0 : index
    %c0_2 = arith.constant 0 : index
    %6 = vector.load %arg2[%c0_1, %c0_2] : memref<128x128xf32, #tpu.memory_space<vmem>>, vector<128x128xf32>
    %cst = arith.constant dense<0.000000e+00> : vector<16x128xf32>
    %7 = tpu.matmul %5, %6, %cst {dimension_numbers = #tpu.dot_dimension_numbers<[1], [0], [0], [1], [0, 0, 1, 1], [], []>} : vector<16x128xf32>, vector<128x128xf32>, vector<16x128xf32> -> vector<16x128xf32>
    %c0_3 = arith.constant 0 : index
    %c0_4 = arith.constant 0 : index
    %8 = vector.load %arg3[%c0_3, %c0_4] : memref<16x128xf32, #tpu.memory_space<vmem>>, vector<16x128xf32>
    %9 = arith.addf %7, %8 : vector<16x128xf32>
    %c0_5 = arith.constant 0 : index
    %c0_6 = arith.constant 0 : index
    %10 = vector.load %arg4[%c0_5, %c0_6] : memref<16x128xf32, #tpu.memory_space<vmem>>, vector<16x128xf32>
    tpu.vector_store %arg4[%c0_5, %c0_6], %9 {strides = array<i32>} : memref<16x128xf32, #tpu.memory_space<vmem>>, vector<16x128xf32>,
    return
  }
  func.func @transform_0(%arg0: i32) -> (i32, i32) {
    %c0_i32 = arith.constant 0 : i32
    %c0_i32_0 = arith.constant 0 : i32
    return %arg0, %c0_i32 : i32, i32
  }
  func.func @transform_1(%arg0: i32) -> (i32, i32) {
    %c0_i32 = arith.constant 0 : i32
    %c0_i32_0 = arith.constant 0 : i32
    %c0_i32_1 = arith.constant 0 : i32
    return %c0_i32, %c0_i32_0 : i32, i32
  }
  func.func @transform_2(%arg0: i32) -> (i32, i32) {
    %c0_i32 = arith.constant 0 : i32
    %c0_i32_0 = arith.constant 0 : i32
    %c0_i32_1 = arith.constant 0 : i32
    return %c0_i32, %c0_i32_0 : i32, i32
  }
  func.func @transform_3(%arg0: i32) -> (i32, i32) {
    %c0_i32 = arith.constant 0 : i32
    %c0_i32_0 = arith.constant 0 : i32
    return %arg0, %c0_i32 : i32, i32
  }
}

</mosaic_0001>

<llo_original>
// kernel: tpu_custom_call.1
$region0: #{tpu_custom_call.1}
  #allocation0 [shape = 'u32[]', space=smem, size = 0x4, offset = 0x4, fixed_abs, tag = 'smem constant byte address 0x4 - core index']
  #allocation1 [shape = 'u32[144,128]{1,0:T(1,128)}', space=vmem, size = 0x12000, scoped, tag = 'internal scratch']
  %s0 = inlined_call_operand.vmem [shape: s32[16,1], index: 0, kind: input, shape index: {}]
  %s1 = inlined_call_operand.hbm [shape: f32[128,128], index: 1, kind: input, shape index: {}]
  %s2 = inlined_call_operand.vmem [shape: f32[16,128], index: 2, kind: input, shape index: {}]
  %s3 = inlined_call_operand.hbm [shape: f32[16,128], index: 3, kind: output, shape index: {}]
  %s4 = sld [smem:[#allocation0]]
  $region26: #{tpu_custom_call.1} parent=0
    _
  %s6 = ssub.s32 1, %s4
  %s7 = scalar_select 0, %s6, %s4
  $region1: #{tpu_custom_call.1} parent=0
    #allocation2 [shape = 'u8[65536]{0}', space=vmem, size = 0x10000, scoped, tag = 'input window, operand 1, single buffered']
    #allocation3 [shape = 's32[1]{0}', space=sflag, size = 0x4, scoped, tag = 'scoped memory for tpu_custom_call.1']
    #allocation4 [shape = 's32[1]{0}', space=sflag, size = 0x4, scoped, tag = 'scoped memory for tpu_custom_call.1']
    #allocation5 [shape = 'u8[8192]{0}', space=vmem, size = 0x2000, scoped, tag = 'output window, operand 0, single buffered']
    %8 = vsyncpa [#allocation3], 0
    %9 = vsyncpa [#allocation4], 0
    // Predicated region
    $region2: #{tpu_custom_call.1} parent=1 // pred_check
      _
    $region3: #{tpu_custom_call.1} parent=1 // pred_check_branch
      %11 = sbr.rel (0) target = $region5
    $region4: #{tpu_custom_call.1} parent=1 // pred_region
      _
    $region5: #{tpu_custom_call.1} parent=1 // pred_fallthru
      _
    // Predicated region
    $region6: #{tpu_custom_call.1} parent=1 // pred_check
      _
    $region7: #{tpu_custom_call.1} parent=1 // pred_check_branch
      %13 = sbr.rel (0) target = $region9
    $region8: #{tpu_custom_call.1} parent=1 // pred_region
      %s15 = ssub.s32 2048, 2048
      %16 = vsyncadd [#allocation3], %s15
      %s17 = sshll.u32 [#allocation2], 4
      %s18 = int_to_ptr.vmem [resolvable:$true] %s17
      %23 = dma.hbm_to_vmem [thread:$0]  %s1, 2048, %s18, [#allocation3], 128, 128, 8
    $region9: #{tpu_custom_call.1} parent=1 // pred_fallthru
      _
    // Predicated region
    $region10: #{tpu_custom_call.1} parent=1 // pred_check
      _
    $region11: #{tpu_custom_call.1} parent=1 // pred_check_branch
      %25 = sbr.rel (0) target = $region13
    $region12: #{tpu_custom_call.1} parent=1 // pred_region
      _
    $region13: #{tpu_custom_call.1} parent=1 // pred_fallthru
      _
    // Predicated region
    $region14: #{tpu_custom_call.1} parent=1 // pred_check
      _
    $region15: #{tpu_custom_call.1} parent=1 // pred_check_branch
      %27 = sbr.rel (0) target = $region17
    $region16: #{tpu_custom_call.1} parent=1 // pred_region
      %28 = dma.done [#allocation3], 2048
    $region17: #{tpu_custom_call.1} parent=1 // pred_fallthru
      _
    %v29 = vld [vmem:[%s0] sm:$0xff]
    %v30 = vld [vmem:[%s0 + $0x8] sm:$0xff]
    %v31 = vlaneseq
    %v32 = vand.u32 %v31, 127
    %33 = vset.pattern.permute.xlu0 0
    %34 = vperm.xlu0 %33, %v29
    %v35 = vpop.permute.xlu0 %34
    %36 = vset.pattern.permute.xlu0 0
    %37 = vperm.xlu0 %36, %v30
    %v38 = vpop.permute.xlu0 %37
    %vm39 = vcmp.eq.s32.totalorder %v32, %v35
    %vm40 = vcmp.eq.s32.totalorder %v32, %v38
    %v41 = vsel %vm39, 1, 0
    %v42 = vsel %vm40, 1, 0
    %v43 = vcvt.s32.f32 %v41
    %v44 = vcvt.s32.f32 %v42
    %v45 = vld [vmem:[#allocation2] sm:$0xff]
    %v46 = vld [vmem:[#allocation2 + $0x8] sm:$0xff]
    %v47 = vld [vmem:[#allocation2 + $0x10] sm:$0xff]
    %v48 = vld [vmem:[#allocation2 + $0x18] sm:$0xff]
    %v49 = vld [vmem:[#allocation2 + $0x20] sm:$0xff]
    %v50 = vld [vmem:[#allocation2 + $0x28] sm:$0xff]
    %v51 = vld [vmem:[#allocation2 + $0x30] sm:$0xff]
    %v52 = vld [vmem:[#allocation2 + $0x38] sm:$0xff]
    %v53 = vld [vmem:[#allocation2 + $0x40] sm:$0xff]
    %v54 = vld [vmem:[#allocation2 + $0x48] sm:$0xff]
    %v55 = vld [vmem:[#allocation2 + $0x50] sm:$0xff]
    %v56 = vld [vmem:[#allocation2 + $0x58] sm:$0xff]
    %v57 = vld [vmem:[#allocation2 + $0x60] sm:$0xff]
    %v58 = vld [vmem:[#allocation2 + $0x68] sm:$0xff]
    %v59 = vld [vmem:[#allocation2 + $0x70] sm:$0xff]
    %v60 = vld [vmem:[#allocation2 + $0x78] sm:$0xff]
    %v61 = vld [vmem:[%s2] sm:$0xff]
    %v62 = vld [vmem:[%s2 + $0x8] sm:$0xff]
    %63 = vmatprep.subr.mxu0 0.0
    %64 = vmatpush1.msra.mxu0 %v45
    %65 = vmatprep.subr.mxu0 0.0
    %66 = vmatpush1.msra.mxu0 %v46
    %67 = vmatprep.subr.mxu0 0.0
    %68 = vmatpush1.msra.mxu0 %v47
    %69 = vmatprep.subr.mxu0 0.0
    %70 = vmatpush1.msra.mxu0 %v48
    %71 = vmatprep.subr.mxu0 0.0
    %72 = vmatpush1.msra.mxu0 %v49
    %73 = vmatprep.subr.mxu0 0.0
    %74 = vmatpush1.msra.mxu0 %v50
    %75 = vmatprep.subr.mxu0 0.0
    %76 = vmatpush1.msra.mxu0 %v51
    %77 = vmatprep.subr.mxu0 0.0
    %78 = vmatpush1.msra.mxu0 %v52
    %79 = vmatprep.subr.mxu0 0.0
    %80 = vmatpush1.msra.mxu0 %v53
    %81 = vmatprep.subr.mxu0 0.0
    %82 = vmatpush1.msra.mxu0 %v54
    %83 = vmatprep.subr.mxu0 0.0
    %84 = vmatpush1.msra.mxu0 %v55
    %85 = vmatprep.subr.mxu0 0.0
    %86 = vmatpush1.msra.mxu0 %v56
    %87 = vmatprep.subr.mxu0 0.0
    %88 = vmatpush1.msra.mxu0 %v57
    %89 = vmatprep.subr.mxu0 0.0
    %90 = vmatpush1.msra.mxu0 %v58
    %91 = vmatprep.subr.mxu0 0.0
    %92 = vmatpush1.msra.mxu0 %v59
    %93 = vmatprep.subr.mxu0 0.0
    %94 = vmatpush1.msra.mxu0 %v60
    %95 = vmatprep.subr.mxu0 0.0
    %96 = vmatpush1.msra.mxu0 0.0
    %97 = vmatprep.subr.mxu0 0.0
    %98 = vmatpush1.msra.mxu0 0.0
    %99 = vmatprep.subr.mxu0 0.0
    %100 = vmatpush1.msra.mxu0 0.0
    %101 = vmatprep.subr.mxu0 0.0
    %102 = vmatpush1.msra.mxu0 0.0
    %103 = vmatprep.subr.mxu0 0.0
    %104 = vmatpush1.msra.mxu0 0.0
    %105 = vmatprep.subr.mxu0 0.0
    %106 = vmatpush1.msra.mxu0 0.0
    %107 = vmatprep.subr.mxu0 0.0
    %108 = vmatpush1.msra.mxu0 0.0
    %109 = vmatprep.subr.mxu0 0.0
    %110 = vmatpush1.msra.mxu0 0.0
    %111 = vmatprep.subr.mxu0 0.0
    %112 = vmatpush1.msra.mxu0 0.0
    %113 = vmatprep.subr.mxu0 0.0
    %114 = vmatpush1.msra.mxu0 0.0
    %115 = vmatprep.subr.mxu0 0.0
    %116 = vmatpush1.msra.mxu0 0.0
    %117 = vmatprep.subr.mxu0 0.0
    %118 = vmatpush1.msra.mxu0 0.0
    %119 = vmatprep.subr.mxu0 0.0
    %120 = vmatpush1.msra.mxu0 0.0
    %121 = vmatprep.subr.mxu0 0.0
    %122 = vmatpush1.msra.mxu0 0.0
    %123 = vmatprep.subr.mxu0 0.0
    %124 = vmatpush1.msra.mxu0 0.0
    %125 = vmatprep.subr.mxu0 0.0
    %126 = vmatpush1.msra.mxu0 0.0
    %127 = vmatprep.mubr.f32.mxu0 0.0
    %128 = vmatmul.mubr.f32.gmra.mrb[0].mxu0 %v43
    %v129 = vpop.f32.mrb[0].mxu0
    %v130 = vadd.f32 %v61, %v129
    %v131 = vpop.f32.mrb[0].mxu0
    %132 = vmatprep.mubr.f32.mxu0 0.0
    %133 = vmatmul.mubr.f32.gmra.mrb[0].mxu0 %v44
    %v134 = vpop.f32.mrb[0].mxu0
    %v135 = vadd.f32 %v62, %v134
    %v136 = vpop.f32.mrb[0].mxu0
    %137 = vdwg.mxu0
    %138 = vst [vmem:[#allocation5] sm:$0xff] %v130
    %139 = vst [vmem:[#allocation5 + $0x8] sm:$0xff] %v135
    // Predicated region
    $region18: #{tpu_custom_call.1} parent=1 // pred_check
      _
    $region19: #{tpu_custom_call.1} parent=1 // pred_check_branch
      %141 = sbr.rel (0) target = $region21
    $region20: #{tpu_custom_call.1} parent=1 // pred_region
      %s143 = ssub.s32 256, 256
      %144 = vsyncadd [#allocation4], %s143
      %s145 = sshll.u32 [#allocation5], 4
      %s146 = int_to_ptr.vmem [resolvable:$true] %s145
      %151 = dma.vmem_to_hbm [thread:$0]  %s146, 256, %s3, [#allocation4], 128, 128, 8
    $region21: #{tpu_custom_call.1} parent=1 // pred_fallthru
      _
    // Predicated region
    $region22: #{tpu_custom_call.1} parent=1 // pred_check
      _
    $region23: #{tpu_custom_call.1} parent=1 // pred_check_branch
      %153 = sbr.rel (0) target = $region25
    $region24: #{tpu_custom_call.1} parent=1 // pred_region
      %154 = dma.done [#allocation4], 256
    $region25: #{tpu_custom_call.1} parent=1 // pred_fallthru
      _
    %155 = vsyncpa [#allocation3], 1
    %156 = vsyncpa [#allocation4], 1

</llo_original>
